<compile_context>
chip_gen: v6e
topology: v6e:2x2x1
jax: 0.10.0
libtpu: 0.0.40
codegen_flags: <defaults>
</compile_context>

<pallas_src>
import jax
import jax.numpy as jnp
from jax.experimental import pallas as pl
from jax.experimental.pallas import tpu as pltpu


_MAX_LANES = 2048                      # wide lane-dense last dim (multiple of 128)
_MAX_TILE_ROWS = 512                   # row cap per tile
_TILE_BYTE_BUDGET = 2 * 1024 * 1024    # per-tile bytes; x4 (in+out, dbl-buffered) = 8 MiB
_VMEM_LIMIT_BYTES = 32 * 1024 * 1024   # scoped VMEM; headroom under v7x's 64 MiB physical


def _identity_kernel(x_ref, o_ref):
    # Stands in for the empty forward() body.  Single full-tile store.
    o_ref[...] = x_ref[...]


def _largest_divisor_multiple_of(total, base, cap):
    """Largest multiple of `base` that divides `total` and is <= `cap` (0 if none)."""
    best = 0
    m = base
    while m <= cap:
        if total % m == 0:
            best = m
        m += base
    return best


def _identity_copy_2d(x2d):
    """Identity copy of a lane-dense 2D slab (rows, lanes) with lanes % 128 == 0."""
    rows, lanes = x2d.shape
    itemsize = x2d.dtype.itemsize
    nbytes = rows * lanes * itemsize
    cost = pl.CostEstimate(flops=0, transcendentals=0, bytes_accessed=2 * nbytes)

    # Pick the largest row tile that (a) divides rows, (b) is a multiple of 8,
    # (c) keeps the per-tile footprint under the byte budget.
    tile_rows = 0
    row_cap = min(_MAX_TILE_ROWS, _TILE_BYTE_BUDGET // (lanes * itemsize))
    if rows % 8 == 0 and row_cap >= 8:
        tile_rows = _largest_divisor_multiple_of(rows, 8, row_cap)

    if tile_rows == 0 or tile_rows >= rows:
        # Small slab (or rows not tileable): single whole-array block, no grid
        # step overhead, no masked stores (block == full array dims).
        grid = (1,)
        block = (rows, lanes)
        dim_sem = ("arbitrary",)
    else:
        grid = (rows // tile_rows,)
        block = (tile_rows, lanes)
        # Only declare the axis parallel when there is enough work to split
        # across v7x's two TensorCores.
        dim_sem = ("parallel",) if grid[0] >= 4 else ("arbitrary",)

    return pl.pallas_call(
        _identity_kernel,
        out_shape=jax.ShapeDtypeStruct((rows, lanes), x2d.dtype),
        grid=grid,
        in_specs=[pl.BlockSpec(block, lambda i: (i, 0))],
        out_specs=pl.BlockSpec(block, lambda i: (i, 0)),
        # Alias output onto the (donated) input: no separate HBM output buffer.
        input_output_aliases={0: 0},
        cost_estimate=cost,
        compiler_params=pltpu.CompilerParams(
            dimension_semantics=dim_sem,
            vmem_limit_bytes=_VMEM_LIMIT_BYTES,
        ),
    )(x2d)


# Donate the slab so the input/output alias is realized end-to-end.
_run_identity_2d = jax.jit(_identity_copy_2d, donate_argnums=(0,))


def identity_copy(x):
    """Lane-dense identity copy of an arbitrary-shaped array via the Pallas kernel."""
    total = x.size
    lanes = _largest_divisor_multiple_of(total, 128, _MAX_LANES)
    if lanes == 0:
        # TODO(synk): element count not a multiple of 128 — identity needs no kernel.
        return x
    x2d = jnp.reshape(x, (total // lanes, lanes))
    y2d = _run_identity_2d(x2d)
    return jnp.reshape(y2d, x.shape)


class TwinTransformer:
    """JAX counterpart of the (empty) PyTorch twinTransformer module."""

    def __init__(self):
        # Reference __init__ defines no parameters.
        pass

    def forward(self):
        # Reference forward() takes no arguments and returns None.
        return None

    __call__ = forward


if __name__ == "__main__":
    key = jax.random.PRNGKey(0)
    k_small, k_big = jax.random.split(key)

    # (1) Module-implied small shape: 2048 f32 elems -> single (1, 2048)
    #     lane-dense block, no grid-step overhead.
    x = jax.random.normal(k_small, (2, 4, 16, 16), dtype=jnp.float32)
    y = identity_copy(x)
    jax.block_until_ready(y)
    # Reference re-derived deterministically (the slab was donated/aliased).
    x_ref = jax.random.normal(k_small, (2, 4, 16, 16), dtype=jnp.float32)
    assert y.shape == x_ref.shape and y.dtype == x_ref.dtype
    assert bool(jnp.array_equal(y, x_ref))

    # (2) Exercise the tiled path: (1024, 2048) f32 -> (256, 2048) tiles,
    #     grid=(4,) parallel, 8 MiB total VMEM footprint.
    big = jax.random.normal(k_big, (1024, 2048), dtype=jnp.float32)
    y_big = identity_copy(big)
    jax.block_until_ready(y_big)
    big_ref = jax.random.normal(k_big, (1024, 2048), dtype=jnp.float32)
    assert bool(jnp.array_equal(y_big, big_ref))

    # Faithful module forward: no inputs, returns None (same as the PyTorch stub).
    model = TwinTransformer()
    assert model() is None

    print("KERNEL_OK")
</pallas_src>

<mosaic_0001>
module attributes {stable_mosaic.version = 11 : i64} {
  func.func @_identity_kernel(%arg0: i32, %arg1: memref<1x2048xf32, #tpu.memory_space<vmem>>, %arg2: memref<1x2048xf32, #tpu.memory_space<vmem>>) attributes {dimension_semantics = [#tpu.dimension_semantics<arbitrary>], iteration_bounds = array<i64: 1>, scalar_prefetch = 0 : i64, scratch_operands = 0 : i64, tpu.core_type = #tpu.core_type<tc>, window_params = [{transform_indices = @transform_0, window_bounds = array<i64: 1, 2048>}, {transform_indices = @transform_1, window_bounds = array<i64: 1, 2048>}]} {
    %c0 = arith.constant 0 : index
    %c0_0 = arith.constant 0 : index
    %0 = vector.load %arg1[%c0, %c0_0] : memref<1x2048xf32, #tpu.memory_space<vmem>>, vector<1x2048xf32>
    %c0_1 = arith.constant 0 : index
    %c0_2 = arith.constant 0 : index
    %1 = vector.load %arg2[%c0_1, %c0_2] : memref<1x2048xf32, #tpu.memory_space<vmem>>, vector<1x2048xf32>
    tpu.vector_store %arg2[%c0_1, %c0_2], %0 {strides = array<i32>} : memref<1x2048xf32, #tpu.memory_space<vmem>>, vector<1x2048xf32>,
    return
  }
  func.func @transform_0(%arg0: i32) -> (i32, i32) {
    %c0_i32 = arith.constant 0 : i32
    %c0_i32_0 = arith.constant 0 : i32
    return %arg0, %c0_i32 : i32, i32
  }
  func.func @transform_1(%arg0: i32) -> (i32, i32) {
    %c0_i32 = arith.constant 0 : i32
    %c0_i32_0 = arith.constant 0 : i32
    return %arg0, %c0_i32 : i32, i32
  }
}

</mosaic_0001>

<llo_original>
// kernel: _identity_copy_2d.1
$region0: #{_identity_copy_2d.1}
  #allocation0 [shape = 'u32[]', space=smem, size = 0x4, offset = 0x4, fixed_abs, tag = 'smem constant byte address 0x4 - core index']
  #allocation1 [shape = 'u32[144,128]{1,0:T(1,128)}', space=vmem, size = 0x12000, scoped, tag = 'internal scratch']
  %s0 = inlined_call_operand.hbm [shape: f32[1,2048], index: 0, kind: input, shape index: {}, may-alias: {0,1}]
  %s1 = inlined_call_operand.hbm [shape: f32[1,2048], index: 1, kind: output, shape index: {}, may-alias: {0,1}]
  %s2 = sld [smem:[#allocation0]]
  $region18: #{_identity_copy_2d.1} parent=0
    _
  %s4 = ssub.s32 1, %s2
  %s5 = scalar_select 0, %s4, %s2
  $region1: #{_identity_copy_2d.1} parent=0
    #allocation2 [shape = 'u8[8192]{0}', space=vmem, size = 0x2000, scoped, tag = 'input window, operand 0, single buffered']
    #allocation3 [shape = 's32[1]{0}', space=sflag, size = 0x4, scoped, tag = 'scoped memory for _identity_copy_2d.1']
    #allocation4 [shape = 's32[1]{0}', space=sflag, size = 0x4, scoped, tag = 'scoped memory for _identity_copy_2d.1']
    #allocation5 [shape = 'u8[8192]{0}', space=vmem, size = 0x2000, scoped, tag = 'output window, operand 0, single buffered']
    %6 = vsyncpa [#allocation3], 0
    %7 = vsyncpa [#allocation4], 0
    // Predicated region
    $region2: #{_identity_copy_2d.1} parent=1 // pred_check
      _
    $region3: #{_identity_copy_2d.1} parent=1 // pred_check_branch
      %9 = sbr.rel (0) target = $region5
    $region4: #{_identity_copy_2d.1} parent=1 // pred_region
      %s11 = ssub.s32 256, 256
      %12 = vsyncadd [#allocation3], %s11
      %s14 = sshll.u32 [#allocation2], 4
      %s15 = int_to_ptr.vmem [resolvable:$true] %s14
      %17 = dma.hbm_to_vmem [thread:$0]  %s0, 256, %s15, [#allocation3]
    $region5: #{_identity_copy_2d.1} parent=1 // pred_fallthru
      _
    // Predicated region
    $region6: #{_identity_copy_2d.1} parent=1 // pred_check
      _
    $region7: #{_identity_copy_2d.1} parent=1 // pred_check_branch
      %19 = sbr.rel (0) target = $region9
    $region8: #{_identity_copy_2d.1} parent=1 // pred_region
      %20 = dma.done [#allocation3], 256
    $region9: #{_identity_copy_2d.1} parent=1 // pred_fallthru
      _
    %v21 = vld [vmem:[#allocation2] sm:$0xff]
    %v22 = vld [vmem:[#allocation2 + $0x8] sm:$0xff]
    %23 = vst [vmem:[#allocation5] sm:$0xff] %v21
    %24 = vst [vmem:[#allocation5 + $0x8] sm:$0xff] %v22
    // Predicated region
    $region10: #{_identity_copy_2d.1} parent=1 // pred_check
      _
    $region11: #{_identity_copy_2d.1} parent=1 // pred_check_branch
      %26 = sbr.rel (0) target = $region13
    $region12: #{_identity_copy_2d.1} parent=1 // pred_region
      %s28 = ssub.s32 256, 256
      %29 = vsyncadd [#allocation4], %s28
      %s31 = sshll.u32 [#allocation5], 4
      %s32 = int_to_ptr.vmem [resolvable:$true] %s31
      %34 = dma.vmem_to_hbm [thread:$0]  %s32, 256, %s1, [#allocation4]
    $region13: #{_identity_copy_2d.1} parent=1 // pred_fallthru
      _
    // Predicated region
    $region14: #{_identity_copy_2d.1} parent=1 // pred_check
      _
    $region15: #{_identity_copy_2d.1} parent=1 // pred_check_branch
      %36 = sbr.rel (0) target = $region17
    $region16: #{_identity_copy_2d.1} parent=1 // pred_region
      %37 = dma.done [#allocation4], 256
    $region17: #{_identity_copy_2d.1} parent=1 // pred_fallthru
      _
    %38 = vsyncpa [#allocation3], 1
    %39 = vsyncpa [#allocation4], 1

</llo_original>
